<compile_context>
chip_gen: v7x
topology: tpu7x:2x2x1
jax: 0.10.0
libtpu: 0.0.40
codegen_flags: <defaults>
</compile_context>

<pallas_src>
import jax
import jax.numpy as jnp
from jax.experimental import pallas as pl
from jax.experimental.pallas import tpu as pltpu


def _adv_net_kernel(x_ref, w1_ref, b1_ref, w2_ref, b2_ref, w3_ref, b3_ref,
                    o_ref, acc_ref):
    """Grid = (batch tiles, in_feature tiles).

    Layer-1 partial products accumulate in acc_ref (f32) across the reduction
    axis; layers 2-3 + sigmoid run on the last K step and write a lane-dense
    (1, TB) row of the output.
    """
    k = pl.program_id(1)

    @pl.when(k == 0)
    def _():
        acc_ref[...] = jnp.zeros_like(acc_ref)

    # In-kernel bf16 cast of the streamed x tile (x stays f32 in HBM; avoids a
    # separate wrapper-side cast pass over the whole activation tensor).
    x = x_ref[...].astype(w1_ref.dtype)                           # (TB, TF)
    acc_ref[...] += jnp.dot(x, w1_ref[...],
                            preferred_element_type=jnp.float32)   # (TB, H) f32

    @pl.when(k == pl.num_programs(1) - 1)
    def _():
        # Layer 1 epilogue: bias + ReLU.  dropout1 = identity (eval mode).
        h1 = jnp.maximum(acc_ref[...] + b1_ref[...], 0.0)         # (TB, H) f32

        # Layer 2: Linear(H, H) + ReLU.  dropout2 = identity (eval mode).
        h2 = jnp.dot(h1.astype(w2_ref.dtype), w2_ref[...],
                     preferred_element_type=jnp.float32)
        h2 = jnp.maximum(h2 + b2_ref[...], 0.0)                   # (TB, H) f32

        # Layer 3: Linear(H, 1) + sigmoid, produced lane-dense as (1, TB).
        # Contracting dim 1 of w3 (1, H) against dim 1 of h2 (TB, H) is the
        # native trans-B MXU form; no XLU transpose of h2 is materialized.
        logits = jax.lax.dot_general(
            w3_ref[...], h2.astype(w3_ref.dtype),
            dimension_numbers=(((1,), (1,)), ((), ())),
            preferred_element_type=jnp.float32,
        )                                                         # (1, TB) f32
        o_ref[...] = jax.nn.sigmoid(logits + b3_ref[0]).astype(o_ref.dtype)


def _vmem_budget_bytes():
    """Generation-aware scoped-VMEM budget (~75% of physical, capped 96 MiB).

    v5e/v6e (128 MiB physical) -> 96 MiB; v7x (64 MiB per TC) -> 48 MiB.
    """
    try:
        phys = int(pltpu.get_tpu_info().vmem_capacity_bytes)
    except Exception:
        phys = 64 * 1024 * 1024  # conservative (v7x per-TC physical)
    return int(min(phys * 3 // 4, 96 * 1024 * 1024))


def _build_call(b_pad, f_pad, H, tb, tf, vmem_bytes, single_buffer_consts):
    nb, nk = b_pad // tb, f_pad // tf

    # Constant-index inputs stay resident in VMEM; a second buffer for them is
    # pure waste, so request single buffering when supported.
    const_mode = pl.Buffered(1) if single_buffer_consts else None
    # W1 is constant across the grid only when there's a single K step.
    w1_mode = const_mode if nk == 1 else None

    in_specs = [
        pl.BlockSpec((tb, tf), lambda i, k: (i, k)),                 # x streamed
        pl.BlockSpec((tf, H), lambda i, k: (k, 0),
                     pipeline_mode=w1_mode),                         # W1
        pl.BlockSpec((1, H), lambda i, k: (0, 0),
                     pipeline_mode=const_mode),                      # b1
        pl.BlockSpec((H, H), lambda i, k: (0, 0),
                     pipeline_mode=const_mode),                      # W2
        pl.BlockSpec((1, H), lambda i, k: (0, 0),
                     pipeline_mode=const_mode),                      # b2
        pl.BlockSpec((1, H), lambda i, k: (0, 0),
                     pipeline_mode=const_mode),                      # W3 (row)
        pl.BlockSpec(memory_space=pltpu.MemorySpace.SMEM),           # b3 scalar
    ]

    cost = pl.CostEstimate(
        flops=2 * b_pad * (f_pad * H + H * H + H),
        transcendentals=b_pad,
        bytes_accessed=(b_pad * f_pad * 4                   # x (f32)
                        + (f_pad * H + H * H + H) * 2       # weights (bf16)
                        + 2 * H * 4                         # biases (f32)
                        + b_pad * 4),                       # output (f32)
    )

    return pl.pallas_call(
        _adv_net_kernel,
        out_shape=jax.ShapeDtypeStruct((1, b_pad), jnp.float32),
        grid=(nb, nk),
        in_specs=in_specs,
        out_specs=pl.BlockSpec((1, tb), lambda i, k: (0, i)),        # lane-dense
        scratch_shapes=[pltpu.VMEM((tb, H), jnp.float32)],           # layer-1 acc
        compiler_params=pltpu.CompilerParams(
            dimension_semantics=("parallel", "arbitrary"),
            vmem_limit_bytes=vmem_bytes,
        ),
        cost_estimate=cost,
    )


def adversarial_network_forward(x, w1, b1, w2, b2, w3, b3, *,
                                block_b=1024, block_f=None,
                                compute_dtype=jnp.bfloat16):
    """Fused MLP forward. x: [B, in_feature] f32. Returns [B, 1] f32."""
    B, F = x.shape
    H = w1.shape[1]
    assert block_b % 128 == 0, "block_b must be a multiple of 128"

    vmem_bytes = _vmem_budget_bytes()

    # --- in_feature (reduction) tiling: keep W1 resident when it fits; else
    #     K-tile it over a trailing 'arbitrary' grid axis. ---
    if block_f is None:
        # Keep W1's resident slab within ~1/4 of the scoped VMEM budget.
        block_f = max(512, (vmem_bytes // 4) // (H * 2) // 128 * 128)
    assert block_f % 128 == 0, "block_f must be a multiple of 128"
    tf = F if F <= block_f else block_f
    f_pad = pl.cdiv(F, tf) * tf

    # --- batch tiling (output is lane-dense, so multi-tile tb % 128 == 0) ---
    if B < 256:
        tb = max(8, pl.cdiv(B, 8) * 8)                 # one small tile
    else:
        # >= 2 tiles so both TensorCores get work on megacore parts (v7x),
        # capped at block_b to amortize per-step overhead on v5e/v6e.
        tb = min(block_b, pl.cdiv(pl.cdiv(B, 2), 128) * 128)

    def _footprint(t):
        x_buf = 2 * t * tf * 4                          # streamed x (f32, 2 bufs)
        w1_buf = (1 if tf == F else 2) * tf * H * 2     # W1 (bf16)
        w_rest = H * H * 2 + H * 2 + 2 * H * 4          # W2 + W3 + b1 + b2
        acc = t * H * 4                                 # layer-1 accumulator
        interm = 2 * t * H * 4                          # h1/h2 temporaries
        out = 2 * t * 4
        return x_buf + w1_buf + w_rest + acc + interm + out

    while tb > 128 and _footprint(tb) > int(0.7 * vmem_bytes):
        tb = max(128, (tb // 2 + 127) // 128 * 128)

    b_pad = pl.cdiv(B, tb) * tb

    # Zero-pad x (and W1 along F) to the tile grid; zero padding contributes
    # nothing to the dot products and padded batch rows are sliced off below.
    if b_pad != B or f_pad != F:
        x = jnp.pad(x, ((0, b_pad - B), (0, f_pad - F)))
    # TODO(synk): fold the pad into the kernel (ragged last tile) to avoid this
    # extra HBM pass when B/F are not tile-aligned.

    w1 = jnp.asarray(w1, jnp.float32)
    if f_pad != F:
        w1 = jnp.pad(w1, ((0, f_pad - F), (0, 0)))
    w1 = w1.astype(compute_dtype)
    w2 = jnp.asarray(w2).astype(compute_dtype)
    w3 = jnp.asarray(w3).reshape(1, H).astype(compute_dtype)
    b1 = jnp.asarray(b1, jnp.float32).reshape(1, H)
    b2 = jnp.asarray(b2, jnp.float32).reshape(1, H)
    b3 = jnp.asarray(b3, jnp.float32).reshape(1)

    def run(single_buffer_consts):
        call = _build_call(b_pad, f_pad, H, tb, tf, vmem_bytes,
                           single_buffer_consts)
        return call(x, w1, b1, w2, b2, w3, b3)

    try:
        y_row = run(True)      # single-buffer the constant weight/bias specs
    except Exception:
        y_row = run(False)     # fallback: default double-buffering

    return y_row.reshape(b_pad, 1)[:B]


def init_params(key, in_feature, hidden_size):
    """Deterministic init mirroring init_weights(): xavier_normal W, zero b."""
    k1, k2, k3 = jax.random.split(key, 3)

    def xavier_normal(k, fan_in, fan_out, shape):
        std = (2.0 / (fan_in + fan_out)) ** 0.5
        return std * jax.random.normal(k, shape, dtype=jnp.float32)

    w1 = xavier_normal(k1, in_feature, hidden_size, (in_feature, hidden_size))
    b1 = jnp.zeros((hidden_size,), jnp.float32)
    w2 = xavier_normal(k2, hidden_size, hidden_size, (hidden_size, hidden_size))
    b2 = jnp.zeros((hidden_size,), jnp.float32)
    w3 = xavier_normal(k3, hidden_size, 1, (1, hidden_size))   # torch layout (1, H)
    b3 = jnp.zeros((), jnp.float32)
    return w1, b1, w2, b2, w3, b3


def reference_forward(x, w1, b1, w2, b2, w3, b3):
    h1 = jnp.maximum(x @ w1 + b1, 0.0)
    h2 = jnp.maximum(h1 @ w2 + b2, 0.0)
    return jax.nn.sigmoid(h2 @ w3.T + b3)


if __name__ == "__main__":
    key = jax.random.PRNGKey(0)
    hidden_size = 32
    kx1, kx2, kx3, kp1, kp2 = jax.random.split(key, 5)

    # Case 1: tiny batch -> single (padded) tile, grid (1, 1).
    in_feature = 32
    params = init_params(kp1, in_feature, hidden_size)
    x_small = jax.random.normal(kx1, (2, in_feature), dtype=jnp.float32)
    y_small = jax.block_until_ready(adversarial_network_forward(x_small, *params))
    y_small_ref = reference_forward(x_small, *params)
    assert y_small.shape == (2, 1), y_small.shape
    assert jnp.allclose(y_small, y_small_ref, atol=3e-2, rtol=3e-2)

    # Case 2: batch >= 256 -> >= 2 batch tiles (megacore path) + padding.
    x_big = jax.random.normal(kx2, (272, in_feature), dtype=jnp.float32)
    y_big = jax.block_until_ready(adversarial_network_forward(x_big, *params))
    y_big_ref = reference_forward(x_big, *params)
    assert y_big.shape == (272, 1), y_big.shape
    assert jnp.allclose(y_big, y_big_ref, atol=3e-2, rtol=3e-2)

    # Case 3: K-tiled layer 1 (in_feature split over the reduction grid axis,
    # with padding of the last F tile).
    in_feature_k = 400
    params_k = init_params(kp2, in_feature_k, hidden_size)
    x_k = jax.random.normal(kx3, (2, in_feature_k), dtype=jnp.float32)
    y_k = jax.block_until_ready(
        adversarial_network_forward(x_k, *params_k, block_f=128))
    y_k_ref = reference_forward(x_k, *params_k)
    assert y_k.shape == (2, 1), y_k.shape
    assert jnp.allclose(y_k, y_k_ref, atol=3e-2, rtol=3e-2)

    print("KERNEL_OK")
</pallas_src>

<mosaic_0001>
module attributes {stable_mosaic.version = 11 : i64} {
  func.func @_adv_net_kernel(%arg0: i32, %arg1: i32, %arg2: memref<8x32xf32, #tpu.memory_space<vmem>>, %arg3: memref<32x32xbf16, #tpu.memory_space<vmem>>, %arg4: memref<1x32xf32, #tpu.memory_space<vmem>>, %arg5: memref<32x32xbf16, #tpu.memory_space<vmem>>, %arg6: memref<1x32xf32, #tpu.memory_space<vmem>>, %arg7: memref<1x32xbf16, #tpu.memory_space<vmem>>, %arg8: memref<1xf32, #tpu.memory_space<smem>>, %arg9: memref<1x8xf32, #tpu.memory_space<vmem>>, %arg10: memref<8x32xf32, #tpu.memory_space<vmem>>) attributes {dimension_semantics = [#tpu.dimension_semantics<parallel>, #tpu.dimension_semantics<arbitrary>], iteration_bounds = array<i64: 1, 1>, scalar_prefetch = 0 : i64, scratch_operands = 1 : i64, tpu.core_type = #tpu.core_type<tc>, window_params = [{transform_indices = @transform_0, window_bounds = array<i64: 8, 32>}, {pipeline_mode = #tpu.pipeline_mode<synchronous>, transform_indices = @transform_1, window_bounds = array<i64: 32, 32>}, {pipeline_mode = #tpu.pipeline_mode<synchronous>, transform_indices = @transform_2, window_bounds = array<i64: 1, 32>}, {pipeline_mode = #tpu.pipeline_mode<synchronous>, transform_indices = @transform_3, window_bounds = array<i64: 32, 32>}, {pipeline_mode = #tpu.pipeline_mode<synchronous>, transform_indices = @transform_4, window_bounds = array<i64: 1, 32>}, {pipeline_mode = #tpu.pipeline_mode<synchronous>, transform_indices = @transform_5, window_bounds = array<i64: 1, 32>}, {transform_indices = @transform_6, window_bounds = array<i64: 1>}, {transform_indices = @transform_7, window_bounds = array<i64: 1, 8>}]} {
    %c0_i32 = arith.constant 0 : i32
    %0 = arith.cmpi eq, %arg1, %c0_i32 : i32
    %1 = arith.extui %0 : i1 to i32
    %c0_i32_0 = arith.constant 0 : i32
    %2 = arith.cmpi ne, %1, %c0_i32_0 : i32
    scf.if %2 {
      %cst_10 = arith.constant 0.000000e+00 : f32
      %13 = vector.broadcast %cst_10 : f32 to vector<8x32xf32>
      %c0_11 = arith.constant 0 : index
      %c0_12 = arith.constant 0 : index
      %14 = vector.load %arg10[%c0_11, %c0_12] : memref<8x32xf32, #tpu.memory_space<vmem>>, vector<8x32xf32>
      tpu.vector_store %arg10[%c0_11, %c0_12], %13 {strides = array<i32>} : memref<8x32xf32, #tpu.memory_space<vmem>>, vector<8x32xf32>,
    } else {
    }
    %c0 = arith.constant 0 : index
    %c0_1 = arith.constant 0 : index
    %3 = vector.load %arg2[%c0, %c0_1] : memref<8x32xf32, #tpu.memory_space<vmem>>, vector<8x32xf32>
    %4 = arith.truncf %3 : vector<8x32xf32> to vector<8x32xbf16>
    %c0_2 = arith.constant 0 : index
    %c0_3 = arith.constant 0 : index
    %5 = vector.load %arg10[%c0_2, %c0_3] : memref<8x32xf32, #tpu.memory_space<vmem>>, vector<8x32xf32>
    %c0_4 = arith.constant 0 : index
    %c0_5 = arith.constant 0 : index
    %6 = vector.load %arg3[%c0_4, %c0_5] : memref<32x32xbf16, #tpu.memory_space<vmem>>, vector<32x32xbf16>
    %cst = arith.constant dense<0.000000e+00> : vector<8x32xf32>
    %7 = tpu.matmul %4, %6, %cst {dimension_numbers = #tpu.dot_dimension_numbers<[1], [0], [0], [1], [0, 0, 1, 1], [], []>} : vector<8x32xbf16>, vector<32x32xbf16>, vector<8x32xf32> -> vector<8x32xf32>
    %8 = arith.addf %5, %7 : vector<8x32xf32>
    %c0_6 = arith.constant 0 : index
    %c0_7 = arith.constant 0 : index
    %9 = vector.load %arg10[%c0_6, %c0_7] : memref<8x32xf32, #tpu.memory_space<vmem>>, vector<8x32xf32>
    tpu.vector_store %arg10[%c0_6, %c0_7], %8 {strides = array<i32>} : memref<8x32xf32, #tpu.memory_space<vmem>>, vector<8x32xf32>,
    %c0_i32_8 = arith.constant 0 : i32
    %10 = arith.cmpi eq, %arg1, %c0_i32_8 : i32
    %11 = arith.extui %10 : i1 to i32
    %c0_i32_9 = arith.constant 0 : i32
    %12 = arith.cmpi ne, %11, %c0_i32_9 : i32
    scf.if %12 {
      %c0_10 = arith.constant 0 : index
      %c0_11 = arith.constant 0 : index
      %13 = vector.load %arg10[%c0_10, %c0_11] : memref<8x32xf32, #tpu.memory_space<vmem>>, vector<8x32xf32>
      %c0_12 = arith.constant 0 : index
      %c0_13 = arith.constant 0 : index
      %14 = vector.load %arg4[%c0_12, %c0_13] : memref<1x32xf32, #tpu.memory_space<vmem>>, vector<1x32xf32>
      %15 = vector.broadcast %14 : vector<1x32xf32> to vector<8x32xf32>
      %16 = arith.addf %13, %15 : vector<8x32xf32>
      %cst_14 = arith.constant 0.000000e+00 : f32
      %17 = vector.broadcast %cst_14 : f32 to vector<8x32xf32>
      %18 = arith.maximumf %16, %17 : vector<8x32xf32>
      %19 = arith.truncf %18 : vector<8x32xf32> to vector<8x32xbf16>
      %c0_15 = arith.constant 0 : index
      %c0_16 = arith.constant 0 : index
      %20 = vector.load %arg5[%c0_15, %c0_16] : memref<32x32xbf16, #tpu.memory_space<vmem>>, vector<32x32xbf16>
      %cst_17 = arith.constant dense<0.000000e+00> : vector<8x32xf32>
      %21 = tpu.matmul %19, %20, %cst_17 {dimension_numbers = #tpu.dot_dimension_numbers<[1], [0], [0], [1], [0, 0, 1, 1], [], []>} : vector<8x32xbf16>, vector<32x32xbf16>, vector<8x32xf32> -> vector<8x32xf32>
      %c0_18 = arith.constant 0 : index
      %c0_19 = arith.constant 0 : index
      %22 = vector.load %arg6[%c0_18, %c0_19] : memref<1x32xf32, #tpu.memory_space<vmem>>, vector<1x32xf32>
      %23 = vector.broadcast %22 : vector<1x32xf32> to vector<8x32xf32>
      %24 = arith.addf %21, %23 : vector<8x32xf32>
      %cst_20 = arith.constant 0.000000e+00 : f32
      %25 = vector.broadcast %cst_20 : f32 to vector<8x32xf32>
      %26 = arith.maximumf %24, %25 : vector<8x32xf32>
      %c0_21 = arith.constant 0 : index
      %c0_22 = arith.constant 0 : index
      %27 = vector.load %arg7[%c0_21, %c0_22] : memref<1x32xbf16, #tpu.memory_space<vmem>>, vector<1x32xbf16>
      %28 = arith.truncf %26 : vector<8x32xf32> to vector<8x32xbf16>
      %cst_23 = arith.constant dense<0.000000e+00> : vector<1x8xf32>
      %29 = tpu.matmul %27, %28, %cst_23 {dimension_numbers = #tpu.dot_dimension_numbers<[1], [1], [0], [0], [0, 0, 1, 0], [], []>} : vector<1x32xbf16>, vector<8x32xbf16>, vector<1x8xf32> -> vector<1x8xf32>
      %c0_24 = arith.constant 0 : index
      %30 = memref.load %arg8[%c0_24] : memref<1xf32, #tpu.memory_space<smem>>
      %31 = vector.broadcast %30 : f32 to vector<1x8xf32>
      %32 = arith.addf %29, %31 : vector<1x8xf32>
      %33 = arith.negf %32 : vector<1x8xf32>
      %34 = math.exp %33 : vector<1x8xf32>
      %cst_25 = arith.constant 1.000000e+00 : f32
      %35 = vector.broadcast %cst_25 : f32 to vector<1x8xf32>
      %36 = arith.addf %35, %34 : vector<1x8xf32>
      %37 = arith.divf %35, %36 : vector<1x8xf32>
      %c0_26 = arith.constant 0 : index
      %c0_27 = arith.constant 0 : index
      %38 = vector.load %arg9[%c0_26, %c0_27] : memref<1x8xf32, #tpu.memory_space<vmem>>, vector<1x8xf32>
      tpu.vector_store %arg9[%c0_26, %c0_27], %37 {strides = array<i32>} : memref<1x8xf32, #tpu.memory_space<vmem>>, vector<1x8xf32>,
    } else {
    }
    return
  }
  func.func @transform_0(%arg0: i32, %arg1: i32) -> (i32, i32) {
    %c0_i32 = arith.constant 0 : i32
    return %arg0, %arg1 : i32, i32
  }
  func.func @transform_1(%arg0: i32, %arg1: i32) -> (i32, i32) {
    %c0_i32 = arith.constant 0 : i32
    %c0_i32_0 = arith.constant 0 : i32
    return %arg1, %c0_i32 : i32, i32
  }
  func.func @transform_2(%arg0: i32, %arg1: i32) -> (i32, i32) {
    %c0_i32 = arith.constant 0 : i32
    %c0_i32_0 = arith.constant 0 : i32
    %c0_i32_1 = arith.constant 0 : i32
    return %c0_i32, %c0_i32_0 : i32, i32
  }
  func.func @transform_3(%arg0: i32, %arg1: i32) -> (i32, i32) {
    %c0_i32 = arith.constant 0 : i32
    %c0_i32_0 = arith.constant 0 : i32
    %c0_i32_1 = arith.constant 0 : i32
    return %c0_i32, %c0_i32_0 : i32, i32
  }
  func.func @transform_4(%arg0: i32, %arg1: i32) -> (i32, i32) {
    %c0_i32 = arith.constant 0 : i32
    %c0_i32_0 = arith.constant 0 : i32
    %c0_i32_1 = arith.constant 0 : i32
    return %c0_i32, %c0_i32_0 : i32, i32
  }
  func.func @transform_5(%arg0: i32, %arg1: i32) -> (i32, i32) {
    %c0_i32 = arith.constant 0 : i32
    %c0_i32_0 = arith.constant 0 : i32
    %c0_i32_1 = arith.constant 0 : i32
    return %c0_i32, %c0_i32_0 : i32, i32
  }
  func.func @transform_6(%arg0: i32, %arg1: i32) -> i32 {
    %c0_i32 = arith.constant 0 : i32
    %c0_i32_0 = arith.constant 0 : i32
    return %c0_i32 : i32
  }
  func.func @transform_7(%arg0: i32, %arg1: i32) -> (i32, i32) {
    %c0_i32 = arith.constant 0 : i32
    %c0_i32_0 = arith.constant 0 : i32
    return %c0_i32, %arg0 : i32, i32
  }
}

module attributes {stable_mosaic.version = 11 : i64} {
  func.func @_adv_net_kernel(%arg0: i32, %arg1: i32, %arg2: memref<8x32xf32, #tpu.memory_space<vmem>>, %arg3: memref<32x32xbf16, #tpu.memory_space<vmem>>, %arg4: memref<1x32xf32, #tpu.memory_space<vmem>>, %arg5: memref<32x32xbf16, #tpu.memory_space<vmem>>, %arg6: memref<1x32xf32, #tpu.memory_space<vmem>>, %arg7: memref<1x32xbf16, #tpu.memory_space<vmem>>, %arg8: memref<1xf32, #tpu.memory_space<smem>>, %arg9: memref<1x8xf32, #tpu.memory_space<vmem>>, %arg10: memref<8x32xf32, #tpu.memory_space<vmem>>) attributes {dimension_semantics = [#tpu.dimension_semantics<parallel>, #tpu.dimension_semantics<arbitrary>], iteration_bounds = array<i64: 1, 1>, scalar_prefetch = 0 : i64, scratch_operands = 1 : i64, tpu.core_type = #tpu.core_type<tc>, window_params = [{transform_indices = @transform_0, window_bounds = array<i64: 8, 32>}, {transform_indices = @transform_1, window_bounds = array<i64: 32, 32>}, {pipeline_mode = #tpu.pipeline_mode<synchronous>, transform_indices = @transform_2, window_bounds = array<i64: 1, 32>}, {pipeline_mode = #tpu.pipeline_mode<synchronous>, transform_indices = @transform_3, window_bounds = array<i64: 32, 32>}, {pipeline_mode = #tpu.pipeline_mode<synchronous>, transform_indices = @transform_4, window_bounds = array<i64: 1, 32>}, {pipeline_mode = #tpu.pipeline_mode<synchronous>, transform_indices = @transform_5, window_bounds = array<i64: 1, 32>}, {transform_indices = @transform_6, window_bounds = array<i64: 1>}, {transform_indices = @transform_7, window_bounds = array<i64: 1, 8>}]} {
    %c0_i32 = arith.constant 0 : i32
    %0 = arith.cmpi eq, %arg1, %c0_i32 : i32
    %1 = arith.extui %0 : i1 to i32
    %c0_i32_0 = arith.constant 0 : i32
    %2 = arith.cmpi ne, %1, %c0_i32_0 : i32
    scf.if %2 {
      %cst_10 = arith.constant 0.000000e+00 : f32
      %13 = vector.broadcast %cst_10 : f32 to vector<8x32xf32>
      %c0_11 = arith.constant 0 : index
      %c0_12 = arith.constant 0 : index
      %14 = vector.load %arg10[%c0_11, %c0_12] : memref<8x32xf32, #tpu.memory_space<vmem>>, vector<8x32xf32>
      tpu.vector_store %arg10[%c0_11, %c0_12], %13 {strides = array<i32>} : memref<8x32xf32, #tpu.memory_space<vmem>>, vector<8x32xf32>,
    } else {
    }
    %c0 = arith.constant 0 : index
    %c0_1 = arith.constant 0 : index
    %3 = vector.load %arg2[%c0, %c0_1] : memref<8x32xf32, #tpu.memory_space<vmem>>, vector<8x32xf32>
    %4 = arith.truncf %3 : vector<8x32xf32> to vector<8x32xbf16>
    %c0_2 = arith.constant 0 : index
    %c0_3 = arith.constant 0 : index
    %5 = vector.load %arg10[%c0_2, %c0_3] : memref<8x32xf32, #tpu.memory_space<vmem>>, vector<8x32xf32>
    %c0_4 = arith.constant 0 : index
    %c0_5 = arith.constant 0 : index
    %6 = vector.load %arg3[%c0_4, %c0_5] : memref<32x32xbf16, #tpu.memory_space<vmem>>, vector<32x32xbf16>
    %cst = arith.constant dense<0.000000e+00> : vector<8x32xf32>
    %7 = tpu.matmul %4, %6, %cst {dimension_numbers = #tpu.dot_dimension_numbers<[1], [0], [0], [1], [0, 0, 1, 1], [], []>} : vector<8x32xbf16>, vector<32x32xbf16>, vector<8x32xf32> -> vector<8x32xf32>
    %8 = arith.addf %5, %7 : vector<8x32xf32>
    %c0_6 = arith.constant 0 : index
    %c0_7 = arith.constant 0 : index
    %9 = vector.load %arg10[%c0_6, %c0_7] : memref<8x32xf32, #tpu.memory_space<vmem>>, vector<8x32xf32>
    tpu.vector_store %arg10[%c0_6, %c0_7], %8 {strides = array<i32>} : memref<8x32xf32, #tpu.memory_space<vmem>>, vector<8x32xf32>,
    %c0_i32_8 = arith.constant 0 : i32
    %10 = arith.cmpi eq, %arg1, %c0_i32_8 : i32
    %11 = arith.extui %10 : i1 to i32
    %c0_i32_9 = arith.constant 0 : i32
    %12 = arith.cmpi ne, %11, %c0_i32_9 : i32
    scf.if %12 {
      %c0_10 = arith.constant 0 : index
      %c0_11 = arith.constant 0 : index
      %13 = vector.load %arg10[%c0_10, %c0_11] : memref<8x32xf32, #tpu.memory_space<vmem>>, vector<8x32xf32>
      %c0_12 = arith.constant 0 : index
      %c0_13 = arith.constant 0 : index
      %14 = vector.load %arg4[%c0_12, %c0_13] : memref<1x32xf32, #tpu.memory_space<vmem>>, vector<1x32xf32>
      %15 = vector.broadcast %14 : vector<1x32xf32> to vector<8x32xf32>
      %16 = arith.addf %13, %15 : vector<8x32xf32>
      %cst_14 = arith.constant 0.000000e+00 : f32
      %17 = vector.broadcast %cst_14 : f32 to vector<8x32xf32>
      %18 = arith.maximumf %16, %17 : vector<8x32xf32>
      %19 = arith.truncf %18 : vector<8x32xf32> to vector<8x32xbf16>
      %c0_15 = arith.constant 0 : index
      %c0_16 = arith.constant 0 : index
      %20 = vector.load %arg5[%c0_15, %c0_16] : memref<32x32xbf16, #tpu.memory_space<vmem>>, vector<32x32xbf16>
      %cst_17 = arith.constant dense<0.000000e+00> : vector<8x32xf32>
      %21 = tpu.matmul %19, %20, %cst_17 {dimension_numbers = #tpu.dot_dimension_numbers<[1], [0], [0], [1], [0, 0, 1, 1], [], []>} : vector<8x32xbf16>, vector<32x32xbf16>, vector<8x32xf32> -> vector<8x32xf32>
      %c0_18 = arith.constant 0 : index
      %c0_19 = arith.constant 0 : index
      %22 = vector.load %arg6[%c0_18, %c0_19] : memref<1x32xf32, #tpu.memory_space<vmem>>, vector<1x32xf32>
      %23 = vector.broadcast %22 : vector<1x32xf32> to vector<8x32xf32>
      %24 = arith.addf %21, %23 : vector<8x32xf32>
      %cst_20 = arith.constant 0.000000e+00 : f32
      %25 = vector.broadcast %cst_20 : f32 to vector<8x32xf32>
      %26 = arith.maximumf %24, %25 : vector<8x32xf32>
      %c0_21 = arith.constant 0 : index
      %c0_22 = arith.constant 0 : index
      %27 = vector.load %arg7[%c0_21, %c0_22] : memref<1x32xbf16, #tpu.memory_space<vmem>>, vector<1x32xbf16>
      %28 = arith.truncf %26 : vector<8x32xf32> to vector<8x32xbf16>
      %cst_23 = arith.constant dense<0.000000e+00> : vector<1x8xf32>
      %29 = tpu.matmul %27, %28, %cst_23 {dimension_numbers = #tpu.dot_dimension_numbers<[1], [1], [0], [0], [0, 0, 1, 0], [], []>} : vector<1x32xbf16>, vector<8x32xbf16>, vector<1x8xf32> -> vector<1x8xf32>
      %c0_24 = arith.constant 0 : index
      %30 = memref.load %arg8[%c0_24] : memref<1xf32, #tpu.memory_space<smem>>
      %31 = vector.broadcast %30 : f32 to vector<1x8xf32>
      %32 = arith.addf %29, %31 : vector<1x8xf32>
      %33 = arith.negf %32 : vector<1x8xf32>
      %34 = math.exp %33 : vector<1x8xf32>
      %cst_25 = arith.constant 1.000000e+00 : f32
      %35 = vector.broadcast %cst_25 : f32 to vector<1x8xf32>
      %36 = arith.addf %35, %34 : vector<1x8xf32>
      %37 = arith.divf %35, %36 : vector<1x8xf32>
      %c0_26 = arith.constant 0 : index
      %c0_27 = arith.constant 0 : index
      %38 = vector.load %arg9[%c0_26, %c0_27] : memref<1x8xf32, #tpu.memory_space<vmem>>, vector<1x8xf32>
      tpu.vector_store %arg9[%c0_26, %c0_27], %37 {strides = array<i32>} : memref<1x8xf32, #tpu.memory_space<vmem>>, vector<1x8xf32>,
    } else {
    }
    return
  }
  func.func @transform_0(%arg0: i32, %arg1: i32) -> (i32, i32) {
    %c0_i32 = arith.constant 0 : i32
    return %arg0, %arg1 : i32, i32
  }
  func.func @transform_1(%arg0: i32, %arg1: i32) -> (i32, i32) {
    %c0_i32 = arith.constant 0 : i32
    %c0_i32_0 = arith.constant 0 : i32
    return %arg1, %c0_i32 : i32, i32
  }
  func.func @transform_2(%arg0: i32, %arg1: i32) -> (i32, i32) {
    %c0_i32 = arith.constant 0 : i32
    %c0_i32_0 = arith.constant 0 : i32
    %c0_i32_1 = arith.constant 0 : i32
    return %c0_i32, %c0_i32_0 : i32, i32
  }
  func.func @transform_3(%arg0: i32, %arg1: i32) -> (i32, i32) {
    %c0_i32 = arith.constant 0 : i32
    %c0_i32_0 = arith.constant 0 : i32
    %c0_i32_1 = arith.constant 0 : i32
    return %c0_i32, %c0_i32_0 : i32, i32
  }
  func.func @transform_4(%arg0: i32, %arg1: i32) -> (i32, i32) {
    %c0_i32 = arith.constant 0 : i32
    %c0_i32_0 = arith.constant 0 : i32
    %c0_i32_1 = arith.constant 0 : i32
    return %c0_i32, %c0_i32_0 : i32, i32
  }
  func.func @transform_5(%arg0: i32, %arg1: i32) -> (i32, i32) {
    %c0_i32 = arith.constant 0 : i32
    %c0_i32_0 = arith.constant 0 : i32
    %c0_i32_1 = arith.constant 0 : i32
    return %c0_i32, %c0_i32_0 : i32, i32
  }
  func.func @transform_6(%arg0: i32, %arg1: i32) -> i32 {
    %c0_i32 = arith.constant 0 : i32
    %c0_i32_0 = arith.constant 0 : i32
    return %c0_i32 : i32
  }
  func.func @transform_7(%arg0: i32, %arg1: i32) -> (i32, i32) {
    %c0_i32 = arith.constant 0 : i32
    %c0_i32_0 = arith.constant 0 : i32
    return %c0_i32, %arg0 : i32, i32
  }
}

</mosaic_0001>

<llo_original>
// kernel: tpu_custom_call.1
$region0: #{tpu_custom_call.1}
  #allocation0 [shape = 'u32[]', space=smem, size = 0x4, offset = 0x4, fixed_abs, tag = 'smem constant byte address 0x4 - core index']
  #allocation1 [shape = 'u32[144,128]{1,0:T(1,128)}', space=vmem, size = 0x12000, scoped, tag = 'internal scratch']
  #allocation2 [shape = 'f32[8,32]{1,0:T(8,128)}', space=vmem, size = 0x1000, scoped, tag = 'scratch operand']
  #allocation3 [shape = 'f32[1]{0:T(128)S(6)}', space=smem, size = 0x200, scoped, tag = 'scoped memory for tpu_custom_call.1']
  %s0 = inlined_call_operand.hbm [shape: f32[8,32], index: 0, kind: input, shape index: {}]
  %s1 = inlined_call_operand.hbm [shape: bf16[32,32], index: 1, kind: input, shape index: {}]
  %s2 = inlined_call_operand.vmem [shape: f32[1,32], index: 2, kind: input, shape index: {}]
  %s3 = inlined_call_operand.hbm [shape: bf16[32,32], index: 3, kind: input, shape index: {}]
  %s4 = inlined_call_operand.vmem [shape: f32[1,32], index: 4, kind: input, shape index: {}]
  %s5 = inlined_call_operand.vmem [shape: bf16[1,32], index: 5, kind: input, shape index: {}]
  %s6 = inlined_call_operand.<no memory space> [shape: f32[1], index: 6, kind: input, shape index: {}]
  %s7 = inlined_call_operand.hbm [shape: f32[1,8], index: 7, kind: output, shape index: {}]
  %s8 = sld [smem:[#allocation0]]
  $region58: #{tpu_custom_call.1} parent=0
    _
  %s10 = ssub.s32 1, %s8
  %s11 = scalar_select 0, %s10, %s8
  %12 = sst [smem:[#allocation3]] %s6
  $region1: #{tpu_custom_call.1} parent=0
    #allocation4 [shape = 'u8[4096]{0}', space=vmem, size = 0x1000, scoped, tag = 'input window, operand 0, single buffered']
    #allocation5 [shape = 's32[1]{0}', space=sflag, size = 0x4, scoped, tag = 'scoped memory for tpu_custom_call.1']
    #allocation6 [shape = 's32[1]{0}', space=sflag, size = 0x4, scoped, tag = 'scoped memory for tpu_custom_call.1']
    #allocation7 [shape = 'u8[8192]{0}', space=vmem, size = 0x2000, scoped, tag = 'input window, operand 1, single buffered']
    #allocation8 [shape = 's32[1]{0}', space=sflag, size = 0x4, scoped, tag = 'scoped memory for tpu_custom_call.1']
    #allocation9 [shape = 'u8[8192]{0}', space=vmem, size = 0x2000, scoped, tag = 'input window, operand 3, single buffered']
    #allocation10 [shape = 'u8[512]{0}', space=vmem, size = 0x400, scoped, tag = 'output window, operand 0, single buffered']
    %13 = vsyncpa [#allocation5], 0
    %14 = vsyncpa [#allocation8], 0
    %15 = vsyncpa [#allocation6], 0
    // Predicated region
    $region2: #{tpu_custom_call.1} parent=1 // pred_check
      _
    $region3: #{tpu_custom_call.1} parent=1 // pred_check_branch
      %17 = sbr.rel (0) target = $region5
    $region4: #{tpu_custom_call.1} parent=1 // pred_region
      %s19 = ssub.s32 128, 128
      %20 = vsyncadd [#allocation5], %s19
      %s22 = sshll.u32 [#allocation4], 4
      %s23 = int_to_ptr.vmem [resolvable:$true] %s22
      %25 = dma.hbm_to_vmem [thread:$0]  %s0, 128, %s23, [#allocation5]
    $region5: #{tpu_custom_call.1} parent=1 // pred_fallthru
      _
    // Predicated region
    $region6: #{tpu_custom_call.1} parent=1 // pred_check
      _
    $region7: #{tpu_custom_call.1} parent=1 // pred_check_branch
      %27 = sbr.rel (0) target = $region9
    $region8: #{tpu_custom_call.1} parent=1 // pred_region
      %s29 = ssub.s32 256, 256
      %30 = vsyncadd [#allocation8], %s29
      %s31 = sshll.u32 [#allocation7], 4
      %s32 = int_to_ptr.vmem [resolvable:$true] %s31
      %37 = dma.hbm_to_vmem [thread:$0]  %s1, 256, %s32, [#allocation8], 64, 64, 4
    $region9: #{tpu_custom_call.1} parent=1 // pred_fallthru
      _
    // Predicated region
    $region10: #{tpu_custom_call.1} parent=1 // pred_check
      _
    $region11: #{tpu_custom_call.1} parent=1 // pred_check_branch
      %39 = sbr.rel (0) target = $region13
    $region12: #{tpu_custom_call.1} parent=1 // pred_region
      _
    $region13: #{tpu_custom_call.1} parent=1 // pred_fallthru
      _
    // Predicated region
    $region14: #{tpu_custom_call.1} parent=1 // pred_check
      _
    $region15: #{tpu_custom_call.1} parent=1 // pred_check_branch
      %41 = sbr.rel (0) target = $region17
    $region16: #{tpu_custom_call.1} parent=1 // pred_region
      %s43 = ssub.s32 256, 256
      %44 = vsyncadd [#allocation8], %s43
      %s45 = sshll.u32 [#allocation9], 4
      %s46 = int_to_ptr.vmem [resolvable:$true] %s45
      %51 = dma.hbm_to_vmem [thread:$0]  %s3, 256, %s46, [#allocation8], 64, 64, 4
    $region17: #{tpu_custom_call.1} parent=1 // pred_fallthru
      _
    // Predicated region
    $region18: #{tpu_custom_call.1} parent=1 // pred_check
      _
    $region19: #{tpu_custom_call.1} parent=1 // pred_check_branch
      %53 = sbr.rel (0) target = $region21
    $region20: #{tpu_custom_call.1} parent=1 // pred_region
      _
    $region21: #{tpu_custom_call.1} parent=1 // pred_fallthru
      _
    // Predicated region
    $region22: #{tpu_custom_call.1} parent=1 // pred_check
      _
    $region23: #{tpu_custom_call.1} parent=1 // pred_check_branch
      %55 = sbr.rel (0) target = $region25
    $region24: #{tpu_custom_call.1} parent=1 // pred_region
      _
    $region25: #{tpu_custom_call.1} parent=1 // pred_fallthru
      _
    // Predicated region
    $region26: #{tpu_custom_call.1} parent=1 // pred_check
      _
    $region27: #{tpu_custom_call.1} parent=1 // pred_check_branch
      %57 = sbr.rel (0) target = $region29
    $region28: #{tpu_custom_call.1} parent=1 // pred_region
      _
    $region29: #{tpu_custom_call.1} parent=1 // pred_fallthru
      _
    // Predicated region
    $region30: #{tpu_custom_call.1} parent=1 // pred_check
      _
    $region31: #{tpu_custom_call.1} parent=1 // pred_check_branch
      %59 = sbr.rel (0) target = $region33
    $region32: #{tpu_custom_call.1} parent=1 // pred_region
      %60 = dma.done [#allocation5], 128
    $region33: #{tpu_custom_call.1} parent=1 // pred_fallthru
      _
    // Predicated region
    $region34: #{tpu_custom_call.1} parent=1 // pred_check
      _
    $region35: #{tpu_custom_call.1} parent=1 // pred_check_branch
      %62 = sbr.rel (0) target = $region37
    $region36: #{tpu_custom_call.1} parent=1 // pred_region
      %63 = dma.done [#allocation8], 256
    $region37: #{tpu_custom_call.1} parent=1 // pred_fallthru
      _
    // Predicated region
    $region38: #{tpu_custom_call.1} parent=1 // pred_check
      _
    $region39: #{tpu_custom_call.1} parent=1 // pred_check_branch
      %65 = sbr.rel (0) target = $region41
    $region40: #{tpu_custom_call.1} parent=1 // pred_region
      %66 = dma.done [#allocation8], 256
    $region41: #{tpu_custom_call.1} parent=1 // pred_fallthru
      _
    %p68 = scmp.eq.s32.totalorder 0, 0
    // Predicated region
    $region42: #{tpu_custom_call.1} parent=1 // pred_check
      %p69 = pneg %p68
    $region43: #{tpu_custom_call.1} parent=1 // pred_check_branch
      %71 = sbr.rel (%p69) target = $region45
    $region44: #{tpu_custom_call.1} parent=1 // pred_region
      %vm72 = vcmask 261120
      %73 = vst.msk [vmem:[#allocation2] sm:$0xff] %vm72, 0.0
    $region45: #{tpu_custom_call.1} parent=1 // pred_fallthru
      _
    %v74 = vld [vmem:[#allocation4] sm:$0xff]
    %v75 = vpack.c.bf16 %v74, %v74
    %v76 = vld [vmem:[#allocation2] sm:$0xff]
    %v77 = vld [vmem:[#allocation7] sm:$0xf]
    %v78 = vld [vmem:[#allocation7 + $0x4] sm:$0xf]
    %v79 = vld [vmem:[#allocation7 + $0x8] sm:$0xf]
    %v80 = vld [vmem:[#allocation7 + $0xc] sm:$0xf]
    %v85 = vunpack.c.l.b16 %v77
    %v86 = vunpack.c.l.b16 %v78
    %v87 = vunpack.c.l.b16 %v79
    %v88 = vunpack.c.l.b16 %v80
    %v89 = vpack.c.b16 %v86, %v85
    %v90 = vpack.c.b16 %v88, %v87
    %vm93 = vcmask 261120
    %v95 = vsel %vm93, %v75, 0
    %97 = vmatprep.subr.bf16.mxu0 0
    %98 = vmatpush1.bf16.msra.mxu0 %v89
    %99 = vmatprep.subr.bf16.mxu0 0
    %100 = vmatpush1.bf16.msra.mxu0 %v90
    %101 = vmatprep.subr.bf16.mxu0 0
    %102 = vmatpush1.bf16.msra.mxu0 0
    %103 = vmatprep.subr.bf16.mxu0 0
    %104 = vmatpush1.bf16.msra.mxu0 0
    %105 = vmatprep.subr.bf16.mxu0 0
    %106 = vmatpush1.bf16.msra.mxu0 0
    %107 = vmatprep.subr.bf16.mxu0 0
    %108 = vmatpush1.bf16.msra.mxu0 0
    %109 = vmatprep.subr.bf16.mxu0 0
    %110 = vmatpush1.bf16.msra.mxu0 0
    %111 = vmatprep.subr.bf16.mxu0 0
    %112 = vmatpush1.bf16.msra.mxu0 0
    %113 = vmatprep.subr.bf16.mxu0 0
    %114 = vmatpush1.bf16.msra.mxu0 0
    %115 = vmatprep.subr.bf16.mxu0 0
    %116 = vmatpush1.bf16.msra.mxu0 0
    %117 = vmatprep.subr.bf16.mxu0 0
    %118 = vmatpush1.bf16.msra.mxu0 0
    %119 = vmatprep.subr.bf16.mxu0 0
    %120 = vmatpush1.bf16.msra.mxu0 0
    %121 = vmatprep.subr.bf16.mxu0 0
    %122 = vmatpush1.bf16.msra.mxu0 0
    %123 = vmatprep.subr.bf16.mxu0 0
    %124 = vmatpush1.bf16.msra.mxu0 0
    %125 = vmatprep.subr.bf16.mxu0 0
    %126 = vmatpush1.bf16.msra.mxu0 0
    %127 = vmatprep.subr.bf16.mxu0 0
    %128 = vmatpush1.bf16.msra.mxu0 0
    %129 = vmatprep.mubr.bf16.mxu0 0
    %130 = vmatmul.mubr.bf16.gmra.mrb[0].mxu0 %v95
    %v131 = vpop.f32.mrb[0].mxu0
    %v132 = vadd.f32 0.0, %v131
    %v133 = vpop.f32.mrb[0].mxu0
    %v134 = vpop.f32.mrb[0].mxu0
    %v135 = vpop.f32.mrb[0].mxu0
    %136 = vdwg.mxu0
    %v137 = vadd.f32 %v76, %v132
    %138 = vst.msk [vmem:[#allocation2] sm:$0xff] %vm93, %v137
    // Predicated region
    $region46: #{tpu_custom_call.1} parent=1 // pred_check
      %p139 = pneg %p68
    $region47: #{tpu_custom_call.1} parent=1 // pred_check_branch
      %141 = sbr.rel (%p139) target = $region49
    $region48: #{tpu_custom_call.1} parent=1 // pred_region
      %v142 = vld [vmem:[#allocation2] sm:$0xff]
      %v143 = vld [vmem:[%s2] sm:$0x1]
      %v145 = vlaneseq
      %v146 = vshrl.u32 %v145, 7
      %v147 = vsub.s32 0, %v146
      %v148 = vrot.slane %v143, %v147
      %v150 = vadd.f32 %v142, %v148
      %v151 = vmax.f32 %v150, 0.0
      %v152 = vpack.c.bf16 %v151, %v151
      %v153 = vld [vmem:[#allocation9] sm:$0xf]
      %v154 = vld [vmem:[#allocation9 + $0x4] sm:$0xf]
      %v155 = vld [vmem:[#allocation9 + $0x8] sm:$0xf]
      %v156 = vld [vmem:[#allocation9 + $0xc] sm:$0xf]
      %v157 = vld [vmem:[%s4] sm:$0x1]
      %v159 = vlaneseq
      %v160 = vshrl.u32 %v159, 7
      %v161 = vsub.s32 0, %v160
      %v162 = vrot.slane %v157, %v161
      %v168 = vunpack.c.l.b16 %v153
      %v169 = vunpack.c.l.b16 %v154
      %v170 = vunpack.c.l.b16 %v155
      %v171 = vunpack.c.l.b16 %v156
      %v172 = vpack.c.b16 %v169, %v168
      %v173 = vpack.c.b16 %v171, %v170
      %v177 = vsel %vm93, %v152, 0
      %179 = vmatprep.subr.bf16.mxu0 0
      %180 = vmatpush1.bf16.msra.mxu0 %v172
      %181 = vmatprep.subr.bf16.mxu0 0
      %182 = vmatpush1.bf16.msra.mxu0 %v173
      %183 = vmatprep.subr.bf16.mxu0 0
      %184 = vmatpush1.bf16.msra.mxu0 0
      %185 = vmatprep.subr.bf16.mxu0 0
      %186 = vmatpush1.bf16.msra.mxu0 0
      %187 = vmatprep.subr.bf16.mxu0 0
      %188 = vmatpush1.bf16.msra.mxu0 0
      %189 = vmatprep.subr.bf16.mxu0 0
      %190 = vmatpush1.bf16.msra.mxu0 0
      %191 = vmatprep.subr.bf16.mxu0 0
      %192 = vmatpush1.bf16.msra.mxu0 0
      %193 = vmatprep.subr.bf16.mxu0 0
      %194 = vmatpush1.bf16.msra.mxu0 0
      %195 = vmatprep.subr.bf16.mxu0 0
      %196 = vmatpush1.bf16.msra.mxu0 0
      %197 = vmatprep.subr.bf16.mxu0 0
      %198 = vmatpush1.bf16.msra.mxu0 0
      %199 = vmatprep.subr.bf16.mxu0 0
      %200 = vmatpush1.bf16.msra.mxu0 0
      %201 = vmatprep.subr.bf16.mxu0 0
      %202 = vmatpush1.bf16.msra.mxu0 0
      %203 = vmatprep.subr.bf16.mxu0 0
      %204 = vmatpush1.bf16.msra.mxu0 0
      %205 = vmatprep.subr.bf16.mxu0 0
      %206 = vmatpush1.bf16.msra.mxu0 0
      %207 = vmatprep.subr.bf16.mxu0 0
      %208 = vmatpush1.bf16.msra.mxu0 0
      %209 = vmatprep.subr.bf16.mxu0 0
      %210 = vmatpush1.bf16.msra.mxu0 0
      %211 = vmatprep.mubr.bf16.mxu0 0
      %212 = vmatmul.mubr.bf16.gmra.mrb[0].mxu0 %v177
      %v213 = vpop.f32.mrb[0].mxu0
      %v214 = vadd.f32 %v162, %v213
      %v215 = vpop.f32.mrb[0].mxu0
      %v216 = vpop.f32.mrb[0].mxu0
      %v217 = vpop.f32.mrb[0].mxu0
      %218 = vdwg.mxu0
      %v219 = vmax.f32 %v214, 0.0
      %v220 = vld [vmem:[%s5] sm:$0x1]
      %v221 = vpack.c.bf16 %v219, %v219
      %s222 = sld [smem:[#allocation3]]
      %v223 = vstv %s222
      %v225 = vsel %vm93, %v220, 0
      %v228 = vsel %vm93, %v221, 0
      %230 = vmatprep.subr.bf16.mxu0 0
      %231 = vmatpush1.bf16.xpose.msra.mxu0 %v228
      %232 = vmatprep.subr.bf16.mxu0 0
      %233 = vmatpush1.bf16.xpose.msra.mxu0 0
      %234 = vmatprep.subr.bf16.mxu0 0
      %235 = vmatpush1.bf16.xpose.msra.mxu0 0
      %236 = vmatprep.subr.bf16.mxu0 0
      %237 = vmatpush1.bf16.xpose.msra.mxu0 0
      %238 = vmatprep.subr.bf16.mxu0 0
      %239 = vmatpush1.bf16.xpose.msra.mxu0 0
      %240 = vmatprep.subr.bf16.mxu0 0
      %241 = vmatpush1.bf16.xpose.msra.mxu0 0
      %242 = vmatprep.subr.bf16.mxu0 0
      %243 = vmatpush1.bf16.xpose.msra.mxu0 0
      %244 = vmatprep.subr.bf16.mxu0 0
      %245 = vmatpush1.bf16.xpose.msra.mxu0 0
      %246 = vmatprep.subr.bf16.mxu0 0
      %247 = vmatpush1.bf16.xpose.msra.mxu0 0
      %248 = vmatprep.subr.bf16.mxu0 0
      %249 = vmatpush1.bf16.xpose.msra.mxu0 0
      %250 = vmatprep.subr.bf16.mxu0 0
      %251 = vmatpush1.bf16.xpose.msra.mxu0 0
      %252 = vmatprep.subr.bf16.mxu0 0
      %253 = vmatpush1.bf16.xpose.msra.mxu0 0
      %254 = vmatprep.subr.bf16.mxu0 0
      %255 = vmatpush1.bf16.xpose.msra.mxu0 0
      %256 = vmatprep.subr.bf16.mxu0 0
      %257 = vmatpush1.bf16.xpose.msra.mxu0 0
      %258 = vmatprep.subr.bf16.mxu0 0
      %259 = vmatpush1.bf16.xpose.msra.mxu0 0
      %260 = vmatprep.subr.bf16.mxu0 0
      %261 = vmatpush1.bf16.xpose.msra.mxu0 0
      %262 = vmatprep.mubr.bf16.mxu0 0
      %263 = vmatmul.mubr.bf16.gmra.mrb[0].mxu0 %v225
      %v264 = vpop.f32.mrb[0].mxu0
      %v265 = vadd.f32 %v223, %v264
      %v266 = vpop.f32.mrb[0].mxu0
      %v267 = vpop.f32.mrb[0].mxu0
      %v268 = vpop.f32.mrb[0].mxu0
      %269 = vdwg.mxu0
      %v270 = vxor.u32 %v265, 2147483648
      %v271 = vmul.f32 %v270, 1.442695
      %v272 = vpow.pop %v271
      %v273 = vadd.f32 %v272, 1.0
      %v274 = vrcp.pop %v273
      %v275 = vmul.f32 1.0, %v274
      %vm276 = vcmask 57344
      %277 = vst.msk [vmem:[#allocation10] sm:$0x1] %vm276, %v275
    $region49: #{tpu_custom_call.1} parent=1 // pred_fallthru
      _
    // Predicated region
    $region50: #{tpu_custom_call.1} parent=1 // pred_check
      _
    $region51: #{tpu_custom_call.1} parent=1 // pred_check_branch
      %279 = sbr.rel (0) target = $region53
    $region52: #{tpu_custom_call.1} parent=1 // pred_region
      %s281 = ssub.s32 16, 16
      %282 = vsyncadd [#allocation6], %s281
      %s284 = sshll.u32 [#allocation10], 4
      %s285 = int_to_ptr.vmem [resolvable:$true] %s284
      %287 = dma.vmem_to_hbm [thread:$0]  %s285, 16, %s7, [#allocation6]
    $region53: #{tpu_custom_call.1} parent=1 // pred_fallthru
      _
    // Predicated region
    $region54: #{tpu_custom_call.1} parent=1 // pred_check
      _
    $region55: #{tpu_custom_call.1} parent=1 // pred_check_branch
      %289 = sbr.rel (0) target = $region57
    $region56: #{tpu_custom_call.1} parent=1 // pred_region
      %290 = dma.done [#allocation6], 16
    $region57: #{tpu_custom_call.1} parent=1 // pred_fallthru
      _
    %291 = vsyncpa [#allocation5], 1
    %292 = vsyncpa [#allocation8], 1
    %293 = vsyncpa [#allocation6], 1

// kernel: tpu_custom_call.1
$region0: #{tpu_custom_call.1}
  #allocation0 [shape = 'u32[]', space=smem, size = 0x4, offset = 0x4, fixed_abs, tag = 'smem constant byte address 0x4 - core index']
  #allocation1 [shape = 'u32[144,128]{1,0:T(1,128)}', space=vmem, size = 0x12000, scoped, tag = 'internal scratch']
  #allocation2 [shape = 'f32[8,32]{1,0:T(8,128)}', space=vmem, size = 0x1000, scoped, tag = 'scratch operand']
  #allocation3 [shape = 'f32[1]{0:T(128)S(6)}', space=smem, size = 0x200, scoped, tag = 'scoped memory for tpu_custom_call.1']
  %s0 = inlined_call_operand.hbm [shape: f32[8,32], index: 0, kind: input, shape index: {}]
  %s1 = inlined_call_operand.hbm [shape: bf16[32,32], index: 1, kind: input, shape index: {}]
  %s2 = inlined_call_operand.vmem [shape: f32[1,32], index: 2, kind: input, shape index: {}]
  %s3 = inlined_call_operand.hbm [shape: bf16[32,32], index: 3, kind: input, shape index: {}]
  %s4 = inlined_call_operand.vmem [shape: f32[1,32], index: 4, kind: input, shape index: {}]
  %s5 = inlined_call_operand.vmem [shape: bf16[1,32], index: 5, kind: input, shape index: {}]
  %s6 = inlined_call_operand.<no memory space> [shape: f32[1], index: 6, kind: input, shape index: {}]
  %s7 = inlined_call_operand.hbm [shape: f32[1,8], index: 7, kind: output, shape index: {}]
  %s8 = sld [smem:[#allocation0]]
  $region58: #{tpu_custom_call.1} parent=0
    _
  %s10 = ssub.s32 1, %s8
  %s11 = scalar_select 0, %s10, %s8
  %12 = sst [smem:[#allocation3]] %s6
  $region1: #{tpu_custom_call.1} parent=0
    #allocation4 [shape = 'u8[4096]{0}', space=vmem, size = 0x1000, scoped, tag = 'input window, operand 0, single buffered']
    #allocation5 [shape = 's32[1]{0}', space=sflag, size = 0x4, scoped, tag = 'scoped memory for tpu_custom_call.1']
    #allocation6 [shape = 's32[1]{0}', space=sflag, size = 0x4, scoped, tag = 'scoped memory for tpu_custom_call.1']
    #allocation7 [shape = 'u8[8192]{0}', space=vmem, size = 0x2000, scoped, tag = 'input window, operand 1, single buffered']
    #allocation8 [shape = 's32[1]{0}', space=sflag, size = 0x4, scoped, tag = 'scoped memory for tpu_custom_call.1']
    #allocation9 [shape = 'u8[8192]{0}', space=vmem, size = 0x2000, scoped, tag = 'input window, operand 3, single buffered']
    #allocation10 [shape = 'u8[512]{0}', space=vmem, size = 0x400, scoped, tag = 'output window, operand 0, single buffered']
    %13 = vsyncpa [#allocation5], 0
    %14 = vsyncpa [#allocation8], 0
    %15 = vsyncpa [#allocation6], 0
    // Predicated region
    $region2: #{tpu_custom_call.1} parent=1 // pred_check
      _
    $region3: #{tpu_custom_call.1} parent=1 // pred_check_branch
      %17 = sbr.rel (0) target = $region5
    $region4: #{tpu_custom_call.1} parent=1 // pred_region
      %s19 = ssub.s32 128, 128
      %20 = vsyncadd [#allocation5], %s19
      %s22 = sshll.u32 [#allocation4], 4
      %s23 = int_to_ptr.vmem [resolvable:$true] %s22
      %25 = dma.hbm_to_vmem [thread:$0]  %s0, 128, %s23, [#allocation5]
    $region5: #{tpu_custom_call.1} parent=1 // pred_fallthru
      _
    // Predicated region
    $region6: #{tpu_custom_call.1} parent=1 // pred_check
      _
    $region7: #{tpu_custom_call.1} parent=1 // pred_check_branch
      %27 = sbr.rel (0) target = $region9
    $region8: #{tpu_custom_call.1} parent=1 // pred_region
      %s29 = ssub.s32 256, 256
      %30 = vsyncadd [#allocation8], %s29
      %s31 = sshll.u32 [#allocation7], 4
      %s32 = int_to_ptr.vmem [resolvable:$true] %s31
      %37 = dma.hbm_to_vmem [thread:$0]  %s1, 256, %s32, [#allocation8], 64, 64, 4
    $region9: #{tpu_custom_call.1} parent=1 // pred_fallthru
      _
    // Predicated region
    $region10: #{tpu_custom_call.1} parent=1 // pred_check
      _
    $region11: #{tpu_custom_call.1} parent=1 // pred_check_branch
      %39 = sbr.rel (0) target = $region13
    $region12: #{tpu_custom_call.1} parent=1 // pred_region
      _
    $region13: #{tpu_custom_call.1} parent=1 // pred_fallthru
      _
    // Predicated region
    $region14: #{tpu_custom_call.1} parent=1 // pred_check
      _
    $region15: #{tpu_custom_call.1} parent=1 // pred_check_branch
      %41 = sbr.rel (0) target = $region17
    $region16: #{tpu_custom_call.1} parent=1 // pred_region
      %s43 = ssub.s32 256, 256
      %44 = vsyncadd [#allocation8], %s43
      %s45 = sshll.u32 [#allocation9], 4
      %s46 = int_to_ptr.vmem [resolvable:$true] %s45
      %51 = dma.hbm_to_vmem [thread:$0]  %s3, 256, %s46, [#allocation8], 64, 64, 4
    $region17: #{tpu_custom_call.1} parent=1 // pred_fallthru
      _
    // Predicated region
    $region18: #{tpu_custom_call.1} parent=1 // pred_check
      _
    $region19: #{tpu_custom_call.1} parent=1 // pred_check_branch
      %53 = sbr.rel (0) target = $region21
    $region20: #{tpu_custom_call.1} parent=1 // pred_region
      _
    $region21: #{tpu_custom_call.1} parent=1 // pred_fallthru
      _
    // Predicated region
    $region22: #{tpu_custom_call.1} parent=1 // pred_check
      _
    $region23: #{tpu_custom_call.1} parent=1 // pred_check_branch
      %55 = sbr.rel (0) target = $region25
    $region24: #{tpu_custom_call.1} parent=1 // pred_region
      _
    $region25: #{tpu_custom_call.1} parent=1 // pred_fallthru
      _
    // Predicated region
    $region26: #{tpu_custom_call.1} parent=1 // pred_check
      _
    $region27: #{tpu_custom_call.1} parent=1 // pred_check_branch
      %57 = sbr.rel (0) target = $region29
    $region28: #{tpu_custom_call.1} parent=1 // pred_region
      _
    $region29: #{tpu_custom_call.1} parent=1 // pred_fallthru
      _
    // Predicated region
    $region30: #{tpu_custom_call.1} parent=1 // pred_check
      _
    $region31: #{tpu_custom_call.1} parent=1 // pred_check_branch
      %59 = sbr.rel (0) target = $region33
    $region32: #{tpu_custom_call.1} parent=1 // pred_region
      %60 = dma.done [#allocation5], 128
    $region33: #{tpu_custom_call.1} parent=1 // pred_fallthru
      _
    // Predicated region
    $region34: #{tpu_custom_call.1} parent=1 // pred_check
      _
    $region35: #{tpu_custom_call.1} parent=1 // pred_check_branch
      %62 = sbr.rel (0) target = $region37
    $region36: #{tpu_custom_call.1} parent=1 // pred_region
      %63 = dma.done [#allocation8], 256
    $region37: #{tpu_custom_call.1} parent=1 // pred_fallthru
      _
    // Predicated region
    $region38: #{tpu_custom_call.1} parent=1 // pred_check
      _
    $region39: #{tpu_custom_call.1} parent=1 // pred_check_branch
      %65 = sbr.rel (0) target = $region41
    $region40: #{tpu_custom_call.1} parent=1 // pred_region
      %66 = dma.done [#allocation8], 256
    $region41: #{tpu_custom_call.1} parent=1 // pred_fallthru
      _
    %p68 = scmp.eq.s32.totalorder 0, 0
    // Predicated region
    $region42: #{tpu_custom_call.1} parent=1 // pred_check
      %p69 = pneg %p68
    $region43: #{tpu_custom_call.1} parent=1 // pred_check_branch
      %71 = sbr.rel (%p69) target = $region45
    $region44: #{tpu_custom_call.1} parent=1 // pred_region
      %vm72 = vcmask 261120
      %73 = vst.msk [vmem:[#allocation2] sm:$0xff] %vm72, 0.0
    $region45: #{tpu_custom_call.1} parent=1 // pred_fallthru
      _
    %v74 = vld [vmem:[#allocation4] sm:$0xff]
    %v75 = vpack.c.bf16 %v74, %v74
    %v76 = vld [vmem:[#allocation2] sm:$0xff]
    %v77 = vld [vmem:[#allocation7] sm:$0xf]
    %v78 = vld [vmem:[#allocation7 + $0x4] sm:$0xf]
    %v79 = vld [vmem:[#allocation7 + $0x8] sm:$0xf]
    %v80 = vld [vmem:[#allocation7 + $0xc] sm:$0xf]
    %v85 = vunpack.c.l.b16 %v77
    %v86 = vunpack.c.l.b16 %v78
    %v87 = vunpack.c.l.b16 %v79
    %v88 = vunpack.c.l.b16 %v80
    %v89 = vpack.c.b16 %v86, %v85
    %v90 = vpack.c.b16 %v88, %v87
    %vm93 = vcmask 261120
    %v95 = vsel %vm93, %v75, 0
    %97 = vmatprep.subr.bf16.mxu0 0
    %98 = vmatpush1.bf16.msra.mxu0 %v89
    %99 = vmatprep.subr.bf16.mxu0 0
    %100 = vmatpush1.bf16.msra.mxu0 %v90
    %101 = vmatprep.subr.bf16.mxu0 0
    %102 = vmatpush1.bf16.msra.mxu0 0
    %103 = vmatprep.subr.bf16.mxu0 0
    %104 = vmatpush1.bf16.msra.mxu0 0
    %105 = vmatprep.subr.bf16.mxu0 0
    %106 = vmatpush1.bf16.msra.mxu0 0
    %107 = vmatprep.subr.bf16.mxu0 0
    %108 = vmatpush1.bf16.msra.mxu0 0
    %109 = vmatprep.subr.bf16.mxu0 0
    %110 = vmatpush1.bf16.msra.mxu0 0
    %111 = vmatprep.subr.bf16.mxu0 0
    %112 = vmatpush1.bf16.msra.mxu0 0
    %113 = vmatprep.subr.bf16.mxu0 0
    %114 = vmatpush1.bf16.msra.mxu0 0
    %115 = vmatprep.subr.bf16.mxu0 0
    %116 = vmatpush1.bf16.msra.mxu0 0
    %117 = vmatprep.subr.bf16.mxu0 0
    %118 = vmatpush1.bf16.msra.mxu0 0
    %119 = vmatprep.subr.bf16.mxu0 0
    %120 = vmatpush1.bf16.msra.mxu0 0
    %121 = vmatprep.subr.bf16.mxu0 0
    %122 = vmatpush1.bf16.msra.mxu0 0
    %123 = vmatprep.subr.bf16.mxu0 0
    %124 = vmatpush1.bf16.msra.mxu0 0
    %125 = vmatprep.subr.bf16.mxu0 0
    %126 = vmatpush1.bf16.msra.mxu0 0
    %127 = vmatprep.subr.bf16.mxu0 0
    %128 = vmatpush1.bf16.msra.mxu0 0
    %129 = vmatprep.mubr.bf16.mxu0 0
    %130 = vmatmul.mubr.bf16.gmra.mrb[0].mxu0 %v95
    %v131 = vpop.f32.mrb[0].mxu0
    %v132 = vadd.f32 0.0, %v131
    %v133 = vpop.f32.mrb[0].mxu0
    %v134 = vpop.f32.mrb[0].mxu0
    %v135 = vpop.f32.mrb[0].mxu0
    %136 = vdwg.mxu0
    %v137 = vadd.f32 %v76, %v132
    %138 = vst.msk [vmem:[#allocation2] sm:$0xff] %vm93, %v137
    // Predicated region
    $region46: #{tpu_custom_call.1} parent=1 // pred_check
      %p139 = pneg %p68
    $region47: #{tpu_custom_call.1} parent=1 // pred_check_branch
      %141 = sbr.rel (%p139) target = $region49
    $region48: #{tpu_custom_call.1} parent=1 // pred_region
      %v142 = vld [vmem:[#allocation2] sm:$0xff]
      %v143 = vld [vmem:[%s2] sm:$0x1]
      %v145 = vlaneseq
      %v146 = vshrl.u32 %v145, 7
      %v147 = vsub.s32 0, %v146
      %v148 = vrot.slane %v143, %v147
      %v150 = vadd.f32 %v142, %v148
      %v151 = vmax.f32 %v150, 0.0
      %v152 = vpack.c.bf16 %v151, %v151
      %v153 = vld [vmem:[#allocation9] sm:$0xf]
      %v154 = vld [vmem:[#allocation9 + $0x4] sm:$0xf]
      %v155 = vld [vmem:[#allocation9 + $0x8] sm:$0xf]
      %v156 = vld [vmem:[#allocation9 + $0xc] sm:$0xf]
      %v157 = vld [vmem:[%s4] sm:$0x1]
      %v159 = vlaneseq
      %v160 = vshrl.u32 %v159, 7
      %v161 = vsub.s32 0, %v160
      %v162 = vrot.slane %v157, %v161
      %v168 = vunpack.c.l.b16 %v153
      %v169 = vunpack.c.l.b16 %v154
      %v170 = vunpack.c.l.b16 %v155
      %v171 = vunpack.c.l.b16 %v156
      %v172 = vpack.c.b16 %v169, %v168
      %v173 = vpack.c.b16 %v171, %v170
      %v177 = vsel %vm93, %v152, 0
      %179 = vmatprep.subr.bf16.mxu0 0
      %180 = vmatpush1.bf16.msra.mxu0 %v172
      %181 = vmatprep.subr.bf16.mxu0 0
      %182 = vmatpush1.bf16.msra.mxu0 %v173
      %183 = vmatprep.subr.bf16.mxu0 0
      %184 = vmatpush1.bf16.msra.mxu0 0
      %185 = vmatprep.subr.bf16.mxu0 0
      %186 = vmatpush1.bf16.msra.mxu0 0
      %187 = vmatprep.subr.bf16.mxu0 0
      %188 = vmatpush1.bf16.msra.mxu0 0
      %189 = vmatprep.subr.bf16.mxu0 0
      %190 = vmatpush1.bf16.msra.mxu0 0
      %191 = vmatprep.subr.bf16.mxu0 0
      %192 = vmatpush1.bf16.msra.mxu0 0
      %193 = vmatprep.subr.bf16.mxu0 0
      %194 = vmatpush1.bf16.msra.mxu0 0
      %195 = vmatprep.subr.bf16.mxu0 0
      %196 = vmatpush1.bf16.msra.mxu0 0
      %197 = vmatprep.subr.bf16.mxu0 0
      %198 = vmatpush1.bf16.msra.mxu0 0
      %199 = vmatprep.subr.bf16.mxu0 0
      %200 = vmatpush1.bf16.msra.mxu0 0
      %201 = vmatprep.subr.bf16.mxu0 0
      %202 = vmatpush1.bf16.msra.mxu0 0
      %203 = vmatprep.subr.bf16.mxu0 0
      %204 = vmatpush1.bf16.msra.mxu0 0
      %205 = vmatprep.subr.bf16.mxu0 0
      %206 = vmatpush1.bf16.msra.mxu0 0
      %207 = vmatprep.subr.bf16.mxu0 0
      %208 = vmatpush1.bf16.msra.mxu0 0
      %209 = vmatprep.subr.bf16.mxu0 0
      %210 = vmatpush1.bf16.msra.mxu0 0
      %211 = vmatprep.mubr.bf16.mxu0 0
      %212 = vmatmul.mubr.bf16.gmra.mrb[0].mxu0 %v177
      %v213 = vpop.f32.mrb[0].mxu0
      %v214 = vadd.f32 %v162, %v213
      %v215 = vpop.f32.mrb[0].mxu0
      %v216 = vpop.f32.mrb[0].mxu0
      %v217 = vpop.f32.mrb[0].mxu0
      %218 = vdwg.mxu0
      %v219 = vmax.f32 %v214, 0.0
      %v220 = vld [vmem:[%s5] sm:$0x1]
      %v221 = vpack.c.bf16 %v219, %v219
      %s222 = sld [smem:[#allocation3]]
      %v223 = vstv %s222
      %v225 = vsel %vm93, %v220, 0
      %v228 = vsel %vm93, %v221, 0
      %230 = vmatprep.subr.bf16.mxu0 0
      %231 = vmatpush1.bf16.xpose.msra.mxu0 %v228
      %232 = vmatprep.subr.bf16.mxu0 0
      %233 = vmatpush1.bf16.xpose.msra.mxu0 0
      %234 = vmatprep.subr.bf16.mxu0 0
      %235 = vmatpush1.bf16.xpose.msra.mxu0 0
      %236 = vmatprep.subr.bf16.mxu0 0
      %237 = vmatpush1.bf16.xpose.msra.mxu0 0
      %238 = vmatprep.subr.bf16.mxu0 0
      %239 = vmatpush1.bf16.xpose.msra.mxu0 0
      %240 = vmatprep.subr.bf16.mxu0 0
      %241 = vmatpush1.bf16.xpose.msra.mxu0 0
      %242 = vmatprep.subr.bf16.mxu0 0
      %243 = vmatpush1.bf16.xpose.msra.mxu0 0
      %244 = vmatprep.subr.bf16.mxu0 0
      %245 = vmatpush1.bf16.xpose.msra.mxu0 0
      %246 = vmatprep.subr.bf16.mxu0 0
      %247 = vmatpush1.bf16.xpose.msra.mxu0 0
      %248 = vmatprep.subr.bf16.mxu0 0
      %249 = vmatpush1.bf16.xpose.msra.mxu0 0
      %250 = vmatprep.subr.bf16.mxu0 0
      %251 = vmatpush1.bf16.xpose.msra.mxu0 0
      %252 = vmatprep.subr.bf16.mxu0 0
      %253 = vmatpush1.bf16.xpose.msra.mxu0 0
      %254 = vmatprep.subr.bf16.mxu0 0
      %255 = vmatpush1.bf16.xpose.msra.mxu0 0
      %256 = vmatprep.subr.bf16.mxu0 0
      %257 = vmatpush1.bf16.xpose.msra.mxu0 0
      %258 = vmatprep.subr.bf16.mxu0 0
      %259 = vmatpush1.bf16.xpose.msra.mxu0 0
      %260 = vmatprep.subr.bf16.mxu0 0
      %261 = vmatpush1.bf16.xpose.msra.mxu0 0
      %262 = vmatprep.mubr.bf16.mxu0 0
      %263 = vmatmul.mubr.bf16.gmra.mrb[0].mxu0 %v225
      %v264 = vpop.f32.mrb[0].mxu0
      %v265 = vadd.f32 %v223, %v264
      %v266 = vpop.f32.mrb[0].mxu0
      %v267 = vpop.f32.mrb[0].mxu0
      %v268 = vpop.f32.mrb[0].mxu0
      %269 = vdwg.mxu0
      %v270 = vxor.u32 %v265, 2147483648
      %v271 = vmul.f32 %v270, 1.442695
      %v272 = vpow.pop %v271
      %v273 = vadd.f32 %v272, 1.0
      %v274 = vrcp.pop %v273
      %v275 = vmul.f32 1.0, %v274
      %vm276 = vcmask 57344
      %277 = vst.msk [vmem:[#allocation10] sm:$0x1] %vm276, %v275
    $region49: #{tpu_custom_call.1} parent=1 // pred_fallthru
      _
    // Predicated region
    $region50: #{tpu_custom_call.1} parent=1 // pred_check
      _
    $region51: #{tpu_custom_call.1} parent=1 // pred_check_branch
      %279 = sbr.rel (0) target = $region53
    $region52: #{tpu_custom_call.1} parent=1 // pred_region
      %s281 = ssub.s32 16, 16
      %282 = vsyncadd [#allocation6], %s281
      %s284 = sshll.u32 [#allocation10], 4
      %s285 = int_to_ptr.vmem [resolvable:$true] %s284
      %287 = dma.vmem_to_hbm [thread:$0]  %s285, 16, %s7, [#allocation6]
    $region53: #{tpu_custom_call.1} parent=1 // pred_fallthru
      _
    // Predicated region
    $region54: #{tpu_custom_call.1} parent=1 // pred_check
      _
    $region55: #{tpu_custom_call.1} parent=1 // pred_check_branch
      %289 = sbr.rel (0) target = $region57
    $region56: #{tpu_custom_call.1} parent=1 // pred_region
      %290 = dma.done [#allocation6], 16
    $region57: #{tpu_custom_call.1} parent=1 // pred_fallthru
      _
    %291 = vsyncpa [#allocation5], 1
    %292 = vsyncpa [#allocation8], 1
    %293 = vsyncpa [#allocation6], 1

</llo_original>
